<compile_context>
chip_gen: v7x
topology: tpu7x:2x2x1
jax: 0.10.0
libtpu: 0.0.40
codegen_flags: <defaults>
</compile_context>

<pallas_src>
import functools

import numpy as np
import jax
import jax.numpy as jnp
from jax.experimental import pallas as pl
from jax.experimental.pallas import tpu as pltpu


# ----------------------------------------------------------------------------
# Deterministic parameter construction (replaces the .npz mel-filter load).
# Slaney-scale mel filterbank, same math as librosa.filters.mel
# (norm='slaney', htk=False), which is what Whisper's mel_filters.npz contains.
# ----------------------------------------------------------------------------
def _hz_to_mel(f):
    f = np.asarray(f, dtype=np.float64)
    f_sp = 200.0 / 3
    mels = f / f_sp
    min_log_hz = 1000.0
    min_log_mel = min_log_hz / f_sp
    logstep = np.log(6.4) / 27.0
    return np.where(f >= min_log_hz,
                    min_log_mel + np.log(np.maximum(f, 1e-10) / min_log_hz) / logstep,
                    mels)


def _mel_to_hz(m):
    m = np.asarray(m, dtype=np.float64)
    f_sp = 200.0 / 3
    freqs = f_sp * m
    min_log_hz = 1000.0
    min_log_mel = min_log_hz / f_sp
    logstep = np.log(6.4) / 27.0
    return np.where(m >= min_log_mel,
                    min_log_hz * np.exp(logstep * (m - min_log_mel)),
                    freqs)


def mel_filterbank(sr, n_fft, n_mels):
    n_freq = n_fft // 2 + 1
    fftfreqs = np.linspace(0.0, sr / 2.0, n_freq)
    mel_pts = _mel_to_hz(np.linspace(_hz_to_mel(0.0), _hz_to_mel(sr / 2.0), n_mels + 2))
    fdiff = np.diff(mel_pts)
    ramps = mel_pts[:, None] - fftfreqs[None, :]
    lower = -ramps[:-2] / fdiff[:-1, None]
    upper = ramps[2:] / fdiff[1:, None]
    weights = np.maximum(0.0, np.minimum(lower, upper))
    enorm = 2.0 / (mel_pts[2:n_mels + 2] - mel_pts[:n_mels])
    weights = weights * enorm[:, None]
    return weights.astype(np.float64)            # (n_mels, n_freq)


def dft_bases(n_fft):
    n_freq = n_fft // 2 + 1
    n = np.arange(n_fft, dtype=np.float64)[:, None]
    f = np.arange(n_freq, dtype=np.float64)[None, :]
    ang = 2.0 * np.pi * n * f / n_fft
    return np.cos(ang), np.sin(ang)              # (n_fft, n_freq) each, f64


def hann_window(n_fft):
    # torch.hann_window(n_fft) is periodic: 0.5 * (1 - cos(2*pi*n/N))
    n = np.arange(n_fft, dtype=np.float64)
    return 0.5 - 0.5 * np.cos(2.0 * np.pi * n / n_fft)


def _round_up(x, m):
    return ((x + m - 1) // m) * m


# ----------------------------------------------------------------------------
# Pallas kernel: one batch element per grid step (transposed orientation).
#
#   chunksT_ref : (hop, n_chunks)       bf16 reflect-padded audio, chunk axis on lanes
#   basisT_ref  : (two_f, n_fft_pad)    bf16 Hann-windowed [cos ; sin] DFT basis
#   mel2T_ref   : (n_mels, two_f)       f32  [mel | mel] (Re/Im halves share weights)
#   out_ref     : (n_mels, T)           f32  log-mel output (PyTorch layout)
#   frames_ref  : (n_fft_pad, T)        bf16 VMEM scratch: assembled STFT frame slab
# ----------------------------------------------------------------------------
def logmel_kernel(chunksT_ref, basisT_ref, mel2T_ref, out_ref, frames_ref, *,
                  hop, n_fft, n_blocks):
    n_fft_pad, T = frames_ref.shape

    # --- STFT framing: framesT[k*hop + i, t] = audio[t*hop + k*hop + i] ---------
    # n_blocks = ceil(n_fft / hop) small copies; the last block may be partial,
    # which is what makes non-divisible hop (Whisper's 400/160) work.
    for k in range(n_blocks):
        r0 = k * hop
        rows = min(hop, n_fft - r0)
        frames_ref[r0:r0 + rows, :] = chunksT_ref[:rows, k:k + T]
    if n_fft_pad > n_fft:
        # Zero the K padding rows (the matching basis columns are zero too, but
        # never feed uninitialized VMEM into the MXU).
        frames_ref[n_fft:, :] = jnp.zeros((n_fft_pad - n_fft, T),
                                          dtype=frames_ref.dtype)

    # --- Real + imaginary DFT in one K=n_fft_pad MXU matmul (bf16 in, f32 acc) --
    # basisT rows [0:n_freq) = windowed cos, rows [n_freq_pad:...) = windowed sin.
    dftT = jnp.dot(basisT_ref[...], frames_ref[...],
                   preferred_element_type=jnp.float32)          # (two_f, T)

    # --- Power spectrum + mel projection (Re^2 + Im^2 summed by the stacked mel)
    powT = dftT * dftT                                          # (two_f, T)
    melT = jnp.dot(mel2T_ref[...], powT,
                   preferred_element_type=jnp.float32)          # (n_mels, T)

    # --- log10, per-batch-element dynamic-range clip, scale ---------------------
    logmel = jnp.log10(jnp.maximum(melT, 1e-10))
    mx = jnp.max(logmel, keepdims=True)                         # amax over (n_mels, T)
    out_ref[...] = (jnp.maximum(logmel, mx - 8.0) + 4.0) * 0.25


# ----------------------------------------------------------------------------
# Wrapper: reflect pad + lane-dense chunk view + constant plumbing.
# ----------------------------------------------------------------------------
class LogMelSpectogramPallas:
    def __init__(self, n_mels=16, n_fft=64, hop_length=16, padding=0, sr=16000):
        self.n_mels = n_mels
        self.n_fft = n_fft
        self.hop_length = hop_length
        self.padding = padding
        self.n_freq = n_fft // 2 + 1

        # Padding: DFT contraction dim padded to a multiple of 128; cos/sin halves
        # each padded to a multiple of 64 so the stacked spectrum axis is a
        # multiple of 128 (second matmul contraction dim).
        self.n_fft_pad = _round_up(n_fft, 128)
        n_freq_pad = _round_up(self.n_freq, 64)
        self.two_f = 2 * n_freq_pad

        win = hann_window(n_fft)                         # (n_fft,) f64
        cos_b, sin_b = dft_bases(n_fft)                  # (n_fft, n_freq) f64

        basisT = np.zeros((self.two_f, self.n_fft_pad), dtype=np.float64)
        basisT[:self.n_freq, :n_fft] = (win[:, None] * cos_b).T
        basisT[n_freq_pad:n_freq_pad + self.n_freq, :n_fft] = (win[:, None] * sin_b).T

        melW = mel_filterbank(sr, n_fft, n_mels)         # (n_mels, n_freq) f64
        mel2T = np.zeros((n_mels, self.two_f), dtype=np.float64)
        mel2T[:, :self.n_freq] = melW
        mel2T[:, n_freq_pad:n_freq_pad + self.n_freq] = melW

        # bf16 basis (MXU operand); mel/log path stays f32.
        self.basisT = jnp.asarray(basisT, dtype=jnp.bfloat16)   # (two_f, n_fft_pad)
        self.mel2T = jnp.asarray(mel2T, dtype=jnp.float32)      # (n_mels, two_f)

    def get_seq_len(self, seq_len):
        # torch: floor(seq_len / hop).to(long)
        # TODO(synk): torch returns int64; JAX default is int32 (same values for
        # realistic audio lengths).
        seq_len = jnp.asarray(seq_len, dtype=jnp.float32)
        return jnp.floor(seq_len / self.hop_length).astype(jnp.int32)

    def __call__(self, x, seq_len):
        seq_len_out = self.get_seq_len(seq_len)
        if self.padding > 0:
            x = jnp.pad(x, ((0, 0), (0, self.padding)))
        x = x.astype(jnp.float32)
        B, L = x.shape
        hop, n_fft = self.hop_length, self.n_fft
        T = L // hop                                     # last STFT frame dropped

        # torch.stft(center=True, pad_mode='reflect') framing.
        pad = n_fft // 2
        xp = jnp.pad(x, ((0, 0), (pad, pad)), mode="reflect")
        Lp = xp.shape[-1]
        n_chunks = -(-Lp // hop)
        Lp_r = n_chunks * hop
        if Lp_r > Lp:                                    # zero tail never read by a kept frame
            xp = jnp.pad(xp, ((0, 0), (0, Lp_r - Lp)))

        # Lane-dense chunk view: (B, hop, n_chunks) with the long chunk axis on
        # lanes; bf16 halves the input DMA bytes.  The (wrapper-side) reshape /
        # transpose is layout plumbing, not compute.
        chunksT = (xp.astype(jnp.bfloat16)
                     .reshape(B, n_chunks, hop)
                     .transpose(0, 2, 1))                # (B, hop, n_chunks)

        n_blocks = -(-n_fft // hop)                      # ceil(n_fft / hop)
        kernel = functools.partial(logmel_kernel, hop=hop, n_fft=n_fft,
                                   n_blocks=n_blocks)

        out = pl.pallas_call(
            kernel,
            out_shape=jax.ShapeDtypeStruct((B, self.n_mels, T), jnp.float32),
            grid=(B,),
            in_specs=[
                pl.BlockSpec((None, hop, n_chunks), lambda b: (b, 0, 0)),
                pl.BlockSpec((self.two_f, self.n_fft_pad), lambda b: (0, 0)),
                pl.BlockSpec((self.n_mels, self.two_f), lambda b: (0, 0)),
            ],
            out_specs=pl.BlockSpec((None, self.n_mels, T), lambda b: (b, 0, 0)),
            scratch_shapes=[pltpu.VMEM((self.n_fft_pad, T), jnp.bfloat16)],
            compiler_params=pltpu.CompilerParams(
                dimension_semantics=("parallel",)),
        )(chunksT, self.basisT, self.mel2T)

        # Output already in PyTorch layout (B, n_mels, T).
        return out, seq_len_out


# ----------------------------------------------------------------------------
# Pure-numpy (f64) reference of the PyTorch module's forward pass.
# ----------------------------------------------------------------------------
def _reference_logmel(x, n_mels, n_fft, hop, sr=16000):
    x = np.asarray(x, dtype=np.float64)
    B, L = x.shape
    T = L // hop
    pad = n_fft // 2
    xp = np.pad(x, ((0, 0), (pad, pad)), mode="reflect")
    win = hann_window(n_fft)
    cos_b, sin_b = dft_bases(n_fft)
    frames = np.stack([xp[:, t * hop:t * hop + n_fft] for t in range(T)], axis=1)
    wf = frames * win[None, None, :]                     # (B, T, n_fft)
    re = wf @ cos_b                                      # (B, T, n_freq)
    im = wf @ sin_b
    power = re ** 2 + im ** 2
    melW = mel_filterbank(sr, n_fft, n_mels)
    mel = np.einsum('mf,btf->bmt', melW, power)          # (B, n_mels, T)
    logm = np.log10(np.maximum(mel, 1e-10))
    logm = np.maximum(logm, logm.max(axis=(1, 2), keepdims=True) - 8.0)
    return ((logm + 4.0) / 4.0).astype(np.float32)


if __name__ == "__main__":
    key = jax.random.PRNGKey(0)
    B, L = 2, 256
    n_mels, n_fft, hop = 16, 64, 16

    x = jax.random.normal(key, (B, L), dtype=jnp.float32)
    seq_len = jnp.array([L, L - 37], dtype=jnp.float32)

    model = LogMelSpectogramPallas(n_mels=n_mels, n_fft=n_fft, hop_length=hop)
    mel, out_seq_len = model(x, seq_len)
    mel = jax.block_until_ready(mel)
    out_seq_len = jax.block_until_ready(out_seq_len)

    assert mel.shape == (B, n_mels, L // hop), mel.shape
    assert out_seq_len.shape == (B,), out_seq_len.shape
    assert bool(jnp.all(jnp.isfinite(mel)))

    # Numerical check against the f64 reference (loose tolerance for bf16 DFT).
    ref = _reference_logmel(np.asarray(x), n_mels=n_mels, n_fft=n_fft, hop=hop)
    err = np.abs(np.asarray(mel) - ref)
    assert float(err.max()) < 0.1 and float(err.mean()) < 0.02, (float(err.max()),
                                                                 float(err.mean()))

    ref_seq = np.floor(np.asarray(seq_len) / hop).astype(np.int32)
    assert np.array_equal(np.asarray(out_seq_len), ref_seq)

    print("KERNEL_OK")
</pallas_src>

<mosaic_0001>
module attributes {stable_mosaic.version = 11 : i64} {
  func.func @logmel_kernel(%arg0: i32, %arg1: memref<1x16x20xbf16, #tpu.memory_space<vmem>>, %arg2: memref<128x128xbf16, #tpu.memory_space<vmem>>, %arg3: memref<16x128xf32, #tpu.memory_space<vmem>>, %arg4: memref<1x16x16xf32, #tpu.memory_space<vmem>>, %arg5: memref<128x16xbf16, #tpu.memory_space<vmem>>) attributes {dimension_semantics = [#tpu.dimension_semantics<parallel>], iteration_bounds = array<i64: 2>, scalar_prefetch = 0 : i64, scratch_operands = 1 : i64, tpu.core_type = #tpu.core_type<tc>, window_params = [{transform_indices = @transform_0, window_bounds = array<i64: 1, 16, 20>}, {pipeline_mode = #tpu.pipeline_mode<synchronous>, transform_indices = @transform_1, window_bounds = array<i64: 128, 128>}, {pipeline_mode = #tpu.pipeline_mode<synchronous>, transform_indices = @transform_2, window_bounds = array<i64: 16, 128>}, {transform_indices = @transform_3, window_bounds = array<i64: 1, 16, 16>}]} {
    %c0 = arith.constant 0 : index
    %c0_0 = arith.constant 0 : index
    %c0_1 = arith.constant 0 : index
    %0 = vector.load %arg1[%c0, %c0_0, %c0_1] : memref<1x16x20xbf16, #tpu.memory_space<vmem>>, vector<1x16x16xbf16>
    %1 = vector.shape_cast %0 : vector<1x16x16xbf16> to vector<16x16xbf16>
    %c0_2 = arith.constant 0 : index
    %c0_3 = arith.constant 0 : index
    %2 = vector.load %arg5[%c0_2, %c0_3] : memref<128x16xbf16, #tpu.memory_space<vmem>>, vector<16x16xbf16>
    tpu.vector_store %arg5[%c0_2, %c0_3], %1 {strides = array<i32>} : memref<128x16xbf16, #tpu.memory_space<vmem>>, vector<16x16xbf16>,
    %c0_4 = arith.constant 0 : index
    %c0_5 = arith.constant 0 : index
    %c1 = arith.constant 1 : index
    %3 = vector.load %arg1[%c0_4, %c0_5, %c1] : memref<1x16x20xbf16, #tpu.memory_space<vmem>>, vector<1x16x16xbf16>
    %4 = vector.shape_cast %3 : vector<1x16x16xbf16> to vector<16x16xbf16>
    %c16 = arith.constant 16 : index
    %c0_6 = arith.constant 0 : index
    %5 = vector.load %arg5[%c16, %c0_6] : memref<128x16xbf16, #tpu.memory_space<vmem>>, vector<16x16xbf16>
    tpu.vector_store %arg5[%c16, %c0_6], %4 {strides = array<i32>} : memref<128x16xbf16, #tpu.memory_space<vmem>>, vector<16x16xbf16>,
    %c0_7 = arith.constant 0 : index
    %c0_8 = arith.constant 0 : index
    %c2 = arith.constant 2 : index
    %6 = vector.load %arg1[%c0_7, %c0_8, %c2] : memref<1x16x20xbf16, #tpu.memory_space<vmem>>, vector<1x16x16xbf16>
    %7 = vector.shape_cast %6 : vector<1x16x16xbf16> to vector<16x16xbf16>
    %c32 = arith.constant 32 : index
    %c0_9 = arith.constant 0 : index
    %8 = vector.load %arg5[%c32, %c0_9] : memref<128x16xbf16, #tpu.memory_space<vmem>>, vector<16x16xbf16>
    tpu.vector_store %arg5[%c32, %c0_9], %7 {strides = array<i32>} : memref<128x16xbf16, #tpu.memory_space<vmem>>, vector<16x16xbf16>,
    %c0_10 = arith.constant 0 : index
    %c0_11 = arith.constant 0 : index
    %c3 = arith.constant 3 : index
    %9 = vector.load %arg1[%c0_10, %c0_11, %c3] : memref<1x16x20xbf16, #tpu.memory_space<vmem>>, vector<1x16x16xbf16>
    %10 = vector.shape_cast %9 : vector<1x16x16xbf16> to vector<16x16xbf16>
    %c48 = arith.constant 48 : index
    %c0_12 = arith.constant 0 : index
    %11 = vector.load %arg5[%c48, %c0_12] : memref<128x16xbf16, #tpu.memory_space<vmem>>, vector<16x16xbf16>
    tpu.vector_store %arg5[%c48, %c0_12], %10 {strides = array<i32>} : memref<128x16xbf16, #tpu.memory_space<vmem>>, vector<16x16xbf16>,
    %cst = arith.constant 0.000000e+00 : bf16
    %12 = vector.broadcast %cst : bf16 to vector<64x16xbf16>
    %c64 = arith.constant 64 : index
    %c0_13 = arith.constant 0 : index
    %13 = vector.load %arg5[%c64, %c0_13] : memref<128x16xbf16, #tpu.memory_space<vmem>>, vector<64x16xbf16>
    tpu.vector_store %arg5[%c64, %c0_13], %12 {strides = array<i32>} : memref<128x16xbf16, #tpu.memory_space<vmem>>, vector<64x16xbf16>,
    %c0_14 = arith.constant 0 : index
    %c0_15 = arith.constant 0 : index
    %14 = vector.load %arg2[%c0_14, %c0_15] : memref<128x128xbf16, #tpu.memory_space<vmem>>, vector<128x128xbf16>
    %c0_16 = arith.constant 0 : index
    %c0_17 = arith.constant 0 : index
    %15 = vector.load %arg5[%c0_16, %c0_17] : memref<128x16xbf16, #tpu.memory_space<vmem>>, vector<128x16xbf16>
    %cst_18 = arith.constant dense<0.000000e+00> : vector<128x16xf32>
    %16 = tpu.matmul %14, %15, %cst_18 {dimension_numbers = #tpu.dot_dimension_numbers<[1], [0], [0], [1], [0, 0, 1, 1], [], []>} : vector<128x128xbf16>, vector<128x16xbf16>, vector<128x16xf32> -> vector<128x16xf32>
    %17 = arith.mulf %16, %16 : vector<128x16xf32>
    %c0_19 = arith.constant 0 : index
    %c0_20 = arith.constant 0 : index
    %18 = vector.load %arg3[%c0_19, %c0_20] : memref<16x128xf32, #tpu.memory_space<vmem>>, vector<16x128xf32>
    %cst_21 = arith.constant dense<0.000000e+00> : vector<16x16xf32>
    %19 = tpu.matmul %18, %17, %cst_21 {dimension_numbers = #tpu.dot_dimension_numbers<[1], [0], [0], [1], [0, 0, 1, 1], [], []>} : vector<16x128xf32>, vector<128x16xf32>, vector<16x16xf32> -> vector<16x16xf32>
    %cst_22 = arith.constant 1.000000e-10 : f32
    %20 = vector.broadcast %cst_22 : f32 to vector<16x16xf32>
    %21 = arith.maximumf %19, %20 : vector<16x16xf32>
    %22 = math.log %21 : vector<16x16xf32>
    %cst_23 = arith.constant 0.434294492 : f32
    %23 = vector.broadcast %cst_23 : f32 to vector<16x16xf32>
    %24 = arith.mulf %22, %23 : vector<16x16xf32>
    %25 = vector.shape_cast %24 : vector<16x16xf32> to vector<1x16x16xf32>
    %cst_24 = arith.constant dense<0xFF800000> : vector<1xf32>
    %26 = vector.multi_reduction <maximumf>, %25, %cst_24 [1, 2] : vector<1x16x16xf32> to vector<1xf32>
    %27 = vector.shape_cast %26 : vector<1xf32> to vector<1x1x1xf32>
    %28 = vector.extract %27[0, 0, 0] : f32 from vector<1x1x1xf32>
    %29 = vector.broadcast %28 : f32 to vector<1x1xf32>
    %cst_25 = arith.constant 8.000000e+00 : f32
    %30 = vector.broadcast %cst_25 : f32 to vector<1x1xf32>
    %31 = arith.subf %29, %30 : vector<1x1xf32>
    %32 = vector.broadcast %31 : vector<1x1xf32> to vector<16x16xf32>
    %33 = arith.maximumf %24, %32 : vector<16x16xf32>
    %cst_26 = arith.constant 4.000000e+00 : f32
    %34 = vector.broadcast %cst_26 : f32 to vector<16x16xf32>
    %35 = arith.addf %33, %34 : vector<16x16xf32>
    %cst_27 = arith.constant 2.500000e-01 : f32
    %36 = vector.broadcast %cst_27 : f32 to vector<16x16xf32>
    %37 = arith.mulf %35, %36 : vector<16x16xf32>
    %c0_28 = arith.constant 0 : index
    %c0_29 = arith.constant 0 : index
    %c0_30 = arith.constant 0 : index
    %38 = vector.load %arg4[%c0_28, %c0_29, %c0_30] : memref<1x16x16xf32, #tpu.memory_space<vmem>>, vector<1x16x16xf32>
    %39 = vector.shape_cast %38 : vector<1x16x16xf32> to vector<16x16xf32>
    %40 = vector.shape_cast %37 : vector<16x16xf32> to vector<1x16x16xf32>
    tpu.vector_store %arg4[%c0_28, %c0_29, %c0_30], %40 {strides = array<i32>} : memref<1x16x16xf32, #tpu.memory_space<vmem>>, vector<1x16x16xf32>,
    return
  }
  func.func @transform_0(%arg0: i32) -> (i32, i32, i32) {
    %c0_i32 = arith.constant 0 : i32
    %c0_i32_0 = arith.constant 0 : i32
    %c0_i32_1 = arith.constant 0 : i32
    return %arg0, %c0_i32, %c0_i32_0 : i32, i32, i32
  }
  func.func @transform_1(%arg0: i32) -> (i32, i32) {
    %c0_i32 = arith.constant 0 : i32
    %c0_i32_0 = arith.constant 0 : i32
    %c0_i32_1 = arith.constant 0 : i32
    return %c0_i32, %c0_i32_0 : i32, i32
  }
  func.func @transform_2(%arg0: i32) -> (i32, i32) {
    %c0_i32 = arith.constant 0 : i32
    %c0_i32_0 = arith.constant 0 : i32
    %c0_i32_1 = arith.constant 0 : i32
    return %c0_i32, %c0_i32_0 : i32, i32
  }
  func.func @transform_3(%arg0: i32) -> (i32, i32, i32) {
    %c0_i32 = arith.constant 0 : i32
    %c0_i32_0 = arith.constant 0 : i32
    %c0_i32_1 = arith.constant 0 : i32
    return %arg0, %c0_i32, %c0_i32_0 : i32, i32, i32
  }
}

</mosaic_0001>

<llo_original>
// kernel: tpu_custom_call.1
$region0: #{tpu_custom_call.1}
  #allocation0 [shape = 'u32[]', space=smem, size = 0x4, offset = 0x4, fixed_abs, tag = 'smem constant byte address 0x4 - core index']
  #allocation1 [shape = 'u32[144,128]{1,0:T(1,128)}', space=vmem, size = 0x12000, scoped, tag = 'internal scratch']
  #allocation2 [shape = 'bf16[128,16]{1,0:T(16,128)(2,1)}', space=vmem, size = 0x8000, scoped, tag = 'scratch operand']
  %s0 = inlined_call_operand.hbm [shape: bf16[2,16,20], index: 0, kind: input, shape index: {}]
  %s1 = inlined_call_operand.hbm [shape: bf16[128,128], index: 1, kind: input, shape index: {}]
  %s2 = inlined_call_operand.hbm [shape: f32[16,128], index: 2, kind: input, shape index: {}]
  %s3 = inlined_call_operand.hbm [shape: f32[2,16,16], index: 3, kind: output, shape index: {}]
  %s4 = sld [smem:[#allocation0]]
  $region57: #{tpu_custom_call.1} parent=0
    _
  %s6 = ssub.s32 1, %s4
  %s7 = scalar_select 0, %s6, %s4
  $region1: #{tpu_custom_call.1} parent=0
    #allocation3 [shape = 'u8[8192]{0}', space=vmem, size = 0x2000, scoped, tag = 'input window, operand 0']
    #allocation4 [shape = 's32[2]{0}', space=sflag, size = 0x8, scoped, tag = 'scoped memory for tpu_custom_call.1']
    #allocation5 [shape = 's32[2]{0}', space=sflag, size = 0x8, scoped, tag = 'scoped memory for tpu_custom_call.1']
    #allocation6 [shape = 'u8[32768]{0}', space=vmem, size = 0x8000, scoped, tag = 'input window, operand 1, single buffered']
    #allocation7 [shape = 's32[1]{0}', space=sflag, size = 0x4, scoped, tag = 'scoped memory for tpu_custom_call.1']
    #allocation8 [shape = 'u8[8192]{0}', space=vmem, size = 0x2000, scoped, tag = 'input window, operand 2, single buffered']
    #allocation9 [shape = 'u8[16384]{0}', space=vmem, size = 0x4000, scoped, tag = 'output window, operand 0']
    %8 = vsyncpa [#allocation4], 0
    %s9 = scalar_lea.sflag [#allocation4], 1
    %10 = vsyncpa %s9, 0
    %11 = vsyncpa [#allocation7], 0
    %12 = vsyncpa [#allocation5], 0
    %s13 = scalar_lea.sflag [#allocation5], 1
    %14 = vsyncpa %s13, 0
    loop: start=0, step=1, limit=4
    $region2: #{tpu_custom_call.1} parent=1 // loop_pre_header
      _
    $region3: #{tpu_custom_call.1} parent=1 // loop_header
      %s16 = sphi 0, %s20
      %p17 = scmp.ge.s32.totalorder %s16, 4
      %s26 = sphi 0, %s28
      %s29 = sphi 0, %s26
      %s30 = sphi 0, %s29
      %s46 = sphi 0, %s30
      %s50 = sphi 0, %s50
      %s52 = sphi 0, %s50
      %s53 = sphi 0, %s52
      %s67 = sphi 0, %s53
      %s71 = sphi 0, %s71
      %s73 = sphi 0, %s71
      %s74 = sphi 0, %s73
      %s88 = sphi 0, %s74
      %s94 = sphi 0, %s96
      %s97 = sphi 0, %s94
      %s98 = sphi 0, %s97
      %s114 = sphi 0, %s98
    $region4: #{tpu_custom_call.1} parent=1 // loop_header_branch
      %19 = sbr.rel (%p17) target = $region8
    $region5: #{tpu_custom_call.1} parent=1 // loop_body
      %s21 = ssub.s32 %s16, 1
      %s22 = ssub.s32 %s16, 2
      %s23 = sadd.s32 %s16, 1
      %s24 = ssub.s32 %s16, %s23
      %p25 = scmp.eq.s32.totalorder %s24, 0
      %s27 = sadd.s32 %s26, 1
      %s28 = scalar_select %p25, %s26, %s27
      %p31 = pneg %p25
      %p32 = scmp.eq.s32.totalorder %s16, 1
      %p33 = por %p31, %p32
      %p34 = scmp.ne.s32.totalorder %s26, %s29
      %p35 = scmp.eq.s32.totalorder %s16, 0
      %p36 = por %p34, %p35
      %p37 = scmp.ne.s32.totalorder %s26, %s29
      %p38 = scmp.eq.s32.totalorder %s21, 1
      %p39 = por %p37, %p38
      %p40 = scmp.ne.s32.totalorder %s29, %s30
      %p41 = scmp.eq.s32.totalorder %s21, 0
      %p42 = por %p40, %p41
      %p43 = scmp.ne.s32.totalorder %s29, %s30
      %p44 = scmp.eq.s32.totalorder %s22, 1
      %p45 = por %p43, %p44
      %p47 = scmp.ne.s32.totalorder %s30, %s46
      %p48 = scmp.eq.s32.totalorder %s22, 0
      %p49 = por %p47, %p48
      %s51 = sadd.s32 %s50, 1
      %p54 = scmp.eq.s32.totalorder %s16, 1
      %p55 = scmp.ne.s32.totalorder %s50, %s52
      %p56 = scmp.eq.s32.totalorder %s16, 0
      %p57 = por %p55, %p56
      %p58 = scmp.ne.s32.totalorder %s50, %s52
      %p59 = scmp.eq.s32.totalorder %s21, 1
      %p60 = por %p58, %p59
      %p61 = scmp.ne.s32.totalorder %s52, %s53
      %p62 = scmp.eq.s32.totalorder %s21, 0
      %p63 = por %p61, %p62
      %p64 = scmp.ne.s32.totalorder %s52, %s53
      %p65 = scmp.eq.s32.totalorder %s22, 1
      %p66 = por %p64, %p65
      %p68 = scmp.ne.s32.totalorder %s53, %s67
      %p69 = scmp.eq.s32.totalorder %s22, 0
      %p70 = por %p68, %p69
      %s72 = sadd.s32 %s71, 1
      %p75 = scmp.eq.s32.totalorder %s16, 1
      %p76 = scmp.ne.s32.totalorder %s71, %s73
      %p77 = scmp.eq.s32.totalorder %s16, 0
      %p78 = por %p76, %p77
      %p79 = scmp.ne.s32.totalorder %s71, %s73
      %p80 = scmp.eq.s32.totalorder %s21, 1
      %p81 = por %p79, %p80
      %p82 = scmp.ne.s32.totalorder %s73, %s74
      %p83 = scmp.eq.s32.totalorder %s21, 0
      %p84 = por %p82, %p83
      %p85 = scmp.ne.s32.totalorder %s73, %s74
      %p86 = scmp.eq.s32.totalorder %s22, 1
      %p87 = por %p85, %p86
      %p89 = scmp.ne.s32.totalorder %s74, %s88
      %p90 = scmp.eq.s32.totalorder %s22, 0
      %p91 = por %p89, %p90
      %s92 = ssub.s32 %s16, %s23
      %p93 = scmp.eq.s32.totalorder %s92, 0
      %s95 = sadd.s32 %s94, 1
      %s96 = scalar_select %p93, %s94, %s95
      %p99 = pneg %p93
      %p100 = scmp.eq.s32.totalorder %s16, 1
      %p101 = por %p99, %p100
      %p102 = scmp.ne.s32.totalorder %s94, %s97
      %p103 = scmp.eq.s32.totalorder %s16, 0
      %p104 = por %p102, %p103
      %p105 = scmp.ne.s32.totalorder %s94, %s97
      %p106 = scmp.eq.s32.totalorder %s21, 1
      %p107 = por %p105, %p106
      %p108 = scmp.ne.s32.totalorder %s97, %s98
      %p109 = scmp.eq.s32.totalorder %s21, 0
      %p110 = por %p108, %p109
      %p111 = scmp.ne.s32.totalorder %s97, %s98
      %p112 = scmp.eq.s32.totalorder %s22, 1
      %p113 = por %p111, %p112
      %p115 = scmp.ne.s32.totalorder %s98, %s114
      %p116 = scmp.eq.s32.totalorder %s22, 0
      %p117 = por %p115, %p116
      %p118 = scmp.le.s32.totalorder 1, %s16
      %p119 = scmp.lt.s32.totalorder %s16, 3
      %p120 = pnand %p118, %p119
      %p121 = pneg %p120
      // Predicated region
      $region9: #{tpu_custom_call.1} parent=5 // pred_check
        _
      $region10: #{tpu_custom_call.1} parent=5 // pred_check_branch
        %123 = sbr.rel (%p120) target = $region12
      $region11: #{tpu_custom_call.1} parent=5 // pred_region
        %s124 = ssub.s32 %s16, 1
        // Predicated region
        $region13: #{tpu_custom_call.1} parent=11 // pred_check
          %p125 = pneg %p63
        $region14: #{tpu_custom_call.1} parent=11 // pred_check_branch
          %127 = sbr.rel (%p125) target = $region16
        $region15: #{tpu_custom_call.1} parent=11 // pred_region
          %s129 = ssub.s32 1024, 1024
          %130 = vsyncadd [#allocation7], %s129
          %s131 = sshll.u32 [#allocation6], 4
          %s132 = int_to_ptr.vmem [resolvable:$true] %s131
          %137 = dma.hbm_to_vmem [thread:$0]  %s1, 1024, %s132, [#allocation7], 64, 64, 4
        $region16: #{tpu_custom_call.1} parent=11 // pred_fallthru
          _
        // Predicated region
        $region17: #{tpu_custom_call.1} parent=11 // pred_check
          %p138 = pneg %p84
        $region18: #{tpu_custom_call.1} parent=11 // pred_check_branch
          %140 = sbr.rel (%p138) target = $region20
        $region19: #{tpu_custom_call.1} parent=11 // pred_region
          %s142 = ssub.s32 256, 256
          %143 = vsyncadd [#allocation7], %s142
          %s144 = sshll.u32 [#allocation8], 4
          %s145 = int_to_ptr.vmem [resolvable:$true] %s144
          %150 = dma.hbm_to_vmem [thread:$0]  %s2, 256, %s145, [#allocation7], 128, 128, 8
        $region20: #{tpu_custom_call.1} parent=11 // pred_fallthru
          _
      $region12: #{tpu_custom_call.1} parent=5 // pred_fallthru
        _
      %p151 = scmp.lt.s32.totalorder %s16, 2
      // Predicated region
      $region21: #{tpu_custom_call.1} parent=5 // pred_check
        %p152 = pneg %p151
      $region22: #{tpu_custom_call.1} parent=5 // pred_check_branch
        %154 = sbr.rel (%p152) target = $region24
      $region23: #{tpu_custom_call.1} parent=5 // pred_region
        // Predicated region
        $region25: #{tpu_custom_call.1} parent=23 // pred_check
          %p155 = pneg %p36
        $region26: #{tpu_custom_call.1} parent=23 // pred_check_branch
          %157 = sbr.rel (%p155) target = $region28
        $region27: #{tpu_custom_call.1} parent=23 // pred_region
          %s158 = sand.u32 %s26, 1
          %s159 = scalar_lea.sflag [#allocation4], %s158
          %s160 = sand.u32 %s26, 1
          %s161 = smul.addr %s160, 8
          %s162 = scalar_lea.vmem [#allocation3], %s161
          %s164 = ssub.s32 128, 128
          %165 = vsyncadd %s159, %s164
          %s166 = smul.addr %s16, 2
          %s167 = smul.addr %s166, 64
          %s168 = scalar_lea.hbm %s0, %s167
          %s169 = sshll.u32 %s162, 4
          %s170 = int_to_ptr.vmem [resolvable:$true] %s169
          %175 = dma.hbm_to_vmem [thread:$0]  %s168, 128, %s170, %s159, 64, 64, 4
        $region28: #{tpu_custom_call.1} parent=23 // pred_fallthru
          _
      $region24: #{tpu_custom_call.1} parent=5 // pred_fallthru
        _
      %p176 = scmp.le.s32.totalorder 1, %s16
      %p177 = scmp.lt.s32.totalorder %s16, 3
      %p178 = pnand %p176, %p177
      %p179 = pneg %p178
      // Predicated region
      $region29: #{tpu_custom_call.1} parent=5 // pred_check
        _
      $region30: #{tpu_custom_call.1} parent=5 // pred_check_branch
        %181 = sbr.rel (%p178) target = $region32
      $region31: #{tpu_custom_call.1} parent=5 // pred_region
        %s182 = ssub.s32 %s16, 1
        %s183 = sand.u32 %s29, 1
        %s184 = scalar_lea.sflag [#allocation4], %s183
        %s185 = sand.u32 %s29, 1
        %s186 = smul.addr %s185, 8
        %s187 = scalar_lea.vmem [#allocation3], %s186
        // Predicated region
        $region33: #{tpu_custom_call.1} parent=31 // pred_check
          %p188 = pneg %p42
        $region34: #{tpu_custom_call.1} parent=31 // pred_check_branch
          %190 = sbr.rel (%p188) target = $region36
        $region35: #{tpu_custom_call.1} parent=31 // pred_region
          %191 = dma.done %s184, 128
        $region36: #{tpu_custom_call.1} parent=31 // pred_fallthru
          _
        // Predicated region
        $region37: #{tpu_custom_call.1} parent=31 // pred_check
          %p192 = pneg %p63
        $region38: #{tpu_custom_call.1} parent=31 // pred_check_branch
          %194 = sbr.rel (%p192) target = $region40
        $region39: #{tpu_custom_call.1} parent=31 // pred_region
          %195 = dma.done [#allocation7], 1024
        $region40: #{tpu_custom_call.1} parent=31 // pred_fallthru
          _
        // Predicated region
        $region41: #{tpu_custom_call.1} parent=31 // pred_check
          %p196 = pneg %p84
        $region42: #{tpu_custom_call.1} parent=31 // pred_check_branch
          %198 = sbr.rel (%p196) target = $region44
        $region43: #{tpu_custom_call.1} parent=31 // pred_region
          %199 = dma.done [#allocation7], 256
        $region44: #{tpu_custom_call.1} parent=31 // pred_fallthru
          _
        %s200 = sand.u32 %s29, 1
        %s201 = scalar_lea.sflag [#allocation4], %s200
        %s202 = sand.u32 %s29, 1
        %s203 = smul.addr %s202, 8
        %s204 = scalar_lea.vmem [#allocation3], %s203
        %p205 = pneg %p42
        %p206 = pneg %p39
        %p207 = pneg %p63
        %p208 = pneg %p60
        %p209 = pneg %p84
        %p210 = pneg %p81
        %p211 = pneg %p110
        %p212 = pneg %p107
        %s213 = sand.u32 %s97, 1
        %s214 = scalar_lea.sflag [#allocation5], %s213
        %s215 = sand.u32 %s97, 1
        %s216 = smul.addr %s215, 16
        %s217 = scalar_lea.vmem [#allocation9], %s216
        %v219 = vld [vmem:[%s187] sm:$0xf]
        %v220 = vld [vmem:[%s187 + $0x4] sm:$0xf]
        %v223 = vunpack.c.l.b16 %v219
        %v224 = vunpack.c.l.b16 %v220
        %v225 = vpack.c.b16 %v224, %v223
        %vm227 = vcmask 130048
        %228 = vst.msk [vmem:[#allocation2] sm:$0xff] %vm227, %v225
        %v229 = vld [vmem:[%s187] sm:$0xf]
        %v230 = vld [vmem:[%s187 + $0x4] sm:$0xf]
        %v233 = vunpack.c.l.b16 %v229
        %v234 = vunpack.c.l.b16 %v230
        %v235 = vpack.c.b16 %v234, %v233
        %236 = vrot.lane.b32.xlu0 %v235, 127
        %v237 = vpop.permute.xlu0 %236
        %239 = vst.msk [vmem:[#allocation2 + $0x8] sm:$0xff] %vm227, %v237
        %v240 = vld [vmem:[%s187] sm:$0xf]
        %v241 = vld [vmem:[%s187 + $0x4] sm:$0xf]
        %v244 = vunpack.c.l.b16 %v240
        %v245 = vunpack.c.l.b16 %v241
        %v246 = vpack.c.b16 %v245, %v244
        %247 = vrot.lane.b32.xlu0 %v246, 126
        %v248 = vpop.permute.xlu0 %247
        %250 = vst.msk [vmem:[#allocation2 + $0x10] sm:$0xff] %vm227, %v248
        %v251 = vld [vmem:[%s187] sm:$0xf]
        %v252 = vld [vmem:[%s187 + $0x4] sm:$0xf]
        %v255 = vunpack.c.l.b16 %v251
        %v256 = vunpack.c.l.b16 %v252
        %v257 = vpack.c.b16 %v256, %v255
        %258 = vrot.lane.b32.xlu0 %v257, 125
        %v259 = vpop.permute.xlu0 %258
        %261 = vst.msk [vmem:[#allocation2 + $0x18] sm:$0xff] %vm227, %v259
        %262 = vst.msk [vmem:[#allocation2 + $0x20] sm:$0xff] %vm227, 0
        %263 = vst.msk [vmem:[#allocation2 + $0x28] sm:$0xff] %vm227, 0
        %264 = vst.msk [vmem:[#allocation2 + $0x30] sm:$0xff] %vm227, 0
        %265 = vst.msk [vmem:[#allocation2 + $0x38] sm:$0xff] %vm227, 0
        %v266 = vld [vmem:[#allocation6] sm:$0xf]
        %v267 = vld [vmem:[#allocation6 + $0x4] sm:$0xf]
        %v268 = vld [vmem:[#allocation6 + $0x8] sm:$0xf]
        %v269 = vld [vmem:[#allocation6 + $0xc] sm:$0xf]
        %v270 = vld [vmem:[#allocation6 + $0x10] sm:$0xf]
        %v271 = vld [vmem:[#allocation6 + $0x14] sm:$0xf]
        %v272 = vld [vmem:[#allocation6 + $0x18] sm:$0xf]
        %v273 = vld [vmem:[#allocation6 + $0x1c] sm:$0xf]
        %v274 = vld [vmem:[#allocation6 + $0x20] sm:$0xf]
        %v275 = vld [vmem:[#allocation6 + $0x24] sm:$0xf]
        %v276 = vld [vmem:[#allocation6 + $0x28] sm:$0xf]
        %v277 = vld [vmem:[#allocation6 + $0x2c] sm:$0xf]
        %v278 = vld [vmem:[#allocation6 + $0x30] sm:$0xf]
        %v279 = vld [vmem:[#allocation6 + $0x34] sm:$0xf]
        %v280 = vld [vmem:[#allocation6 + $0x38] sm:$0xf]
        %v281 = vld [vmem:[#allocation6 + $0x3c] sm:$0xf]
        %v282 = vld [vmem:[#allocation2] sm:$0xff]
        %v283 = vld [vmem:[#allocation2 + $0x8] sm:$0xff]
        %v284 = vld [vmem:[#allocation2 + $0x10] sm:$0xff]
        %v285 = vld [vmem:[#allocation2 + $0x18] sm:$0xff]
        %v286 = vld [vmem:[#allocation2 + $0x20] sm:$0xff]
        %v287 = vld [vmem:[#allocation2 + $0x28] sm:$0xff]
        %v288 = vld [vmem:[#allocation2 + $0x30] sm:$0xff]
        %v289 = vld [vmem:[#allocation2 + $0x38] sm:$0xff]
        %v306 = vunpack.c.l.b16 %v266
        %v307 = vunpack.c.l.b16 %v267
        %v308 = vunpack.c.l.b16 %v268
        %v309 = vunpack.c.l.b16 %v269
        %v310 = vunpack.c.l.b16 %v270
        %v311 = vunpack.c.l.b16 %v271
        %v312 = vunpack.c.l.b16 %v272
        %v313 = vunpack.c.l.b16 %v273
        %v314 = vunpack.c.l.b16 %v274
        %v315 = vunpack.c.l.b16 %v275
        %v316 = vunpack.c.l.b16 %v276
        %v317 = vunpack.c.l.b16 %v277
        %v318 = vunpack.c.l.b16 %v278
        %v319 = vunpack.c.l.b16 %v279
        %v320 = vunpack.c.l.b16 %v280
        %v321 = vunpack.c.l.b16 %v281
        %v322 = vpack.c.b16 %v307, %v306
        %v323 = vpack.c.b16 %v309, %v308
        %v324 = vpack.c.b16 %v311, %v310
        %v325 = vpack.c.b16 %v313, %v312
        %v326 = vpack.c.b16 %v315, %v314
        %v327 = vpack.c.b16 %v317, %v316
        %v328 = vpack.c.b16 %v319, %v318
        %v329 = vpack.c.b16 %v321, %v320
        %338 = vmatprep.subr.bf16.mxu0 0
        %339 = vmatpush1.bf16.msra.mxu0 %v282
        %340 = vmatprep.subr.bf16.mxu0 0
        %341 = vmatpush1.bf16.msra.mxu0 %v283
        %342 = vmatprep.subr.bf16.mxu0 0
        %343 = vmatpush1.bf16.msra.mxu0 %v284
        %344 = vmatprep.subr.bf16.mxu0 0
        %345 = vmatpush1.bf16.msra.mxu0 %v285
        %346 = vmatprep.subr.bf16.mxu0 0
        %347 = vmatpush1.bf16.msra.mxu0 %v286
        %348 = vmatprep.subr.bf16.mxu0 0
        %349 = vmatpush1.bf16.msra.mxu0 %v287
        %350 = vmatprep.subr.bf16.mxu0 0
        %351 = vmatpush1.bf16.msra.mxu0 %v288
        %352 = vmatprep.subr.bf16.mxu0 0
        %353 = vmatpush1.bf16.msra.mxu0 %v289
        %354 = vmatprep.subr.bf16.mxu0 0
        %355 = vmatpush1.bf16.msra.mxu0 0
        %356 = vmatprep.subr.bf16.mxu0 0
        %357 = vmatpush1.bf16.msra.mxu0 0
        %358 = vmatprep.subr.bf16.mxu0 0
        %359 = vmatpush1.bf16.msra.mxu0 0
        %360 = vmatprep.subr.bf16.mxu0 0
        %361 = vmatpush1.bf16.msra.mxu0 0
        %362 = vmatprep.subr.bf16.mxu0 0
        %363 = vmatpush1.bf16.msra.mxu0 0
        %364 = vmatprep.subr.bf16.mxu0 0
        %365 = vmatpush1.bf16.msra.mxu0 0
        %366 = vmatprep.subr.bf16.mxu0 0
        %367 = vmatpush1.bf16.msra.mxu0 0
        %368 = vmatprep.subr.bf16.mxu0 0
        %369 = vmatpush1.bf16.msra.mxu0 0
        %370 = vmatprep.mubr.bf16.mxu0 0
        %371 = vmatmul.mubr.bf16.gmra.mrb[0].mxu0 %v322
        %v372 = vpop.f32.mrb[0].mxu0
        %v373 = vadd.f32 0.0, %v372
        %v374 = vpop.f32.mrb[0].mxu0
        %v375 = vpop.f32.mrb[0].mxu0
        %v376 = vadd.f32 0.0, %v375
        %v377 = vpop.f32.mrb[0].mxu0
        %378 = vmatprep.mubr.bf16.mxu0 0
        %379 = vmatmul.mubr.bf16.gmra.mrb[0].mxu0 %v323
        %v380 = vpop.f32.mrb[0].mxu0
        %v381 = vadd.f32 0.0, %v380
        %v382 = vpop.f32.mrb[0].mxu0
        %v383 = vpop.f32.mrb[0].mxu0
        %v384 = vadd.f32 0.0, %v383
        %v385 = vpop.f32.mrb[0].mxu0
        %386 = vmatprep.mubr.bf16.mxu0 0
        %387 = vmatmul.mubr.bf16.gmra.mrb[0].mxu0 %v324
        %v388 = vpop.f32.mrb[0].mxu0
        %v389 = vadd.f32 0.0, %v388
        %v390 = vpop.f32.mrb[0].mxu0
        %v391 = vpop.f32.mrb[0].mxu0
        %v392 = vadd.f32 0.0, %v391
        %v393 = vpop.f32.mrb[0].mxu0
        %394 = vmatprep.mubr.bf16.mxu0 0
        %395 = vmatmul.mubr.bf16.gmra.mrb[0].mxu0 %v325
        %v396 = vpop.f32.mrb[0].mxu0
        %v397 = vadd.f32 0.0, %v396
        %v398 = vpop.f32.mrb[0].mxu0
        %v399 = vpop.f32.mrb[0].mxu0
        %v400 = vadd.f32 0.0, %v399
        %v401 = vpop.f32.mrb[0].mxu0
        %402 = vmatprep.mubr.bf16.mxu0 0
        %403 = vmatmul.mubr.bf16.gmra.mrb[0].mxu0 %v326
        %v404 = vpop.f32.mrb[0].mxu0
        %v405 = vadd.f32 0.0, %v404
        %v406 = vpop.f32.mrb[0].mxu0
        %v407 = vpop.f32.mrb[0].mxu0
        %v408 = vadd.f32 0.0, %v407
        %v409 = vpop.f32.mrb[0].mxu0
        %410 = vmatprep.mubr.bf16.mxu0 0
        %411 = vmatmul.mubr.bf16.gmra.mrb[0].mxu0 %v327
        %v412 = vpop.f32.mrb[0].mxu0
        %v413 = vadd.f32 0.0, %v412
        %v414 = vpop.f32.mrb[0].mxu0
        %v415 = vpop.f32.mrb[0].mxu0
        %v416 = vadd.f32 0.0, %v415
        %v417 = vpop.f32.mrb[0].mxu0
        %418 = vmatprep.mubr.bf16.mxu0 0
        %419 = vmatmul.mubr.bf16.gmra.mrb[0].mxu0 %v328
        %v420 = vpop.f32.mrb[0].mxu0
        %v421 = vadd.f32 0.0, %v420
        %v422 = vpop.f32.mrb[0].mxu0
        %v423 = vpop.f32.mrb[0].mxu0
        %v424 = vadd.f32 0.0, %v423
        %v425 = vpop.f32.mrb[0].mxu0
        %426 = vmatprep.mubr.bf16.mxu0 0
        %427 = vmatmul.mubr.bf16.gmra.mrb[0].mxu0 %v329
        %v428 = vpop.f32.mrb[0].mxu0
        %v429 = vadd.f32 0.0, %v428
        %v430 = vpop.f32.mrb[0].mxu0
        %v431 = vpop.f32.mrb[0].mxu0
        %v432 = vadd.f32 0.0, %v431
        %v433 = vpop.f32.mrb[0].mxu0
        %434 = vdwg.mxu0
        %v435 = vmul.f32 %v373, %v373
        %v436 = vmul.f32 %v376, %v376
        %v437 = vmul.f32 %v381, %v381
        %v438 = vmul.f32 %v384, %v384
        %v439 = vmul.f32 %v389, %v389
        %v440 = vmul.f32 %v392, %v392
        %v441 = vmul.f32 %v397, %v397
        %v442 = vmul.f32 %v400, %v400
        %v443 = vmul.f32 %v405, %v405
        %v444 = vmul.f32 %v408, %v408
        %v445 = vmul.f32 %v413, %v413
        %v446 = vmul.f32 %v416, %v416
        %v447 = vmul.f32 %v421, %v421
        %v448 = vmul.f32 %v424, %v424
        %v449 = vmul.f32 %v429, %v429
        %v450 = vmul.f32 %v432, %v432
        %v451 = vld [vmem:[#allocation8] sm:$0xff]
        %v452 = vld [vmem:[#allocation8 + $0x8] sm:$0xff]
        %453 = vmatprep.subr.mxu0 0.0
        %454 = vmatpush1.msra.mxu0 %v435
        %455 = vmatprep.subr.mxu0 0.0
        %456 = vmatpush1.msra.mxu0 %v436
        %457 = vmatprep.subr.mxu0 0.0
        %458 = vmatpush1.msra.mxu0 %v437
        %459 = vmatprep.subr.mxu0 0.0
        %460 = vmatpush1.msra.mxu0 %v438
        %461 = vmatprep.subr.mxu0 0.0
        %462 = vmatpush1.msra.mxu0 %v439
        %463 = vmatprep.subr.mxu0 0.0
        %464 = vmatpush1.msra.mxu0 %v440
        %465 = vmatprep.subr.mxu0 0.0
        %466 = vmatpush1.msra.mxu0 %v441
        %467 = vmatprep.subr.mxu0 0.0
        %468 = vmatpush1.msra.mxu0 %v442
        %469 = vmatprep.subr.mxu0 0.0
        %470 = vmatpush1.msra.mxu0 %v443
        %471 = vmatprep.subr.mxu0 0.0
        %472 = vmatpush1.msra.mxu0 %v444
        %473 = vmatprep.subr.mxu0 0.0
        %474 = vmatpush1.msra.mxu0 %v445
        %475 = vmatprep.subr.mxu0 0.0
        %476 = vmatpush1.msra.mxu0 %v446
        %477 = vmatprep.subr.mxu0 0.0
        %478 = vmatpush1.msra.mxu0 %v447
        %479 = vmatprep.subr.mxu0 0.0
        %480 = vmatpush1.msra.mxu0 %v448
        %481 = vmatprep.subr.mxu0 0.0
        %482 = vmatpush1.msra.mxu0 %v449
        %483 = vmatprep.subr.mxu0 0.0
        %484 = vmatpush1.msra.mxu0 %v450
        %485 = vmatprep.subr.mxu0 0.0
        %486 = vmatpush1.msra.mxu0 0.0
        %487 = vmatprep.subr.mxu0 0.0
        %488 = vmatpush1.msra.mxu0 0.0
        %489 = vmatprep.subr.mxu0 0.0
        %490 = vmatpush1.msra.mxu0 0.0
        %491 = vmatprep.subr.mxu0 0.0
        %492 = vmatpush1.msra.mxu0 0.0
        %493 = vmatprep.subr.mxu0 0.0
        %494 = vmatpush1.msra.mxu0 0.0
        %495 = vmatprep.subr.mxu0 0.0
        %496 = vmatpush1.msra.mxu0 0.0
        %497 = vmatprep.subr.mxu0 0.0
        %498 = vmatpush1.msra.mxu0 0.0
        %499 = vmatprep.subr.mxu0 0.0
        %500 = vmatpush1.msra.mxu0 0.0
        %501 = vmatprep.subr.mxu0 0.0
        %502 = vmatpush1.msra.mxu0 0.0
        %503 = vmatprep.subr.mxu0 0.0
        %504 = vmatpush1.msra.mxu0 0.0
        %505 = vmatprep.subr.mxu0 0.0
        %506 = vmatpush1.msra.mxu0 0.0
        %507 = vmatprep.subr.mxu0 0.0
        %508 = vmatpush1.msra.mxu0 0.0
        %509 = vmatprep.subr.mxu0 0.0
        %510 = vmatpush1.msra.mxu0 0.0
        %511 = vmatprep.subr.mxu0 0.0
        %512 = vmatpush1.msra.mxu0 0.0
        %513 = vmatprep.subr.mxu0 0.0
        %514 = vmatpush1.msra.mxu0 0.0
        %515 = vmatprep.subr.mxu0 0.0
        %516 = vmatpush1.msra.mxu0 0.0
        %517 = vmatprep.mubr.f32.mxu0 0.0
        %518 = vmatmul.mubr.f32.gmra.mrb[0].mxu0 %v451
        %v519 = vpop.f32.mrb[0].mxu0
        %v520 = vadd.f32 0.0, %v519
        %v521 = vpop.f32.mrb[0].mxu0
        %522 = vmatprep.mubr.f32.mxu0 0.0
        %523 = vmatmul.mubr.f32.gmra.mrb[0].mxu0 %v452
        %v524 = vpop.f32.mrb[0].mxu0
        %v525 = vadd.f32 0.0, %v524
        %v526 = vpop.f32.mrb[0].mxu0
        %527 = vdwg.mxu0
        %v528 = vmax.f32 %v520, 1e-10
        %v529 = vmax.f32 %v525, 1e-10
        %v530 = vlog2.pop %v528
        %v531 = vmul.f32 %v530, 0.6931472
        %v532 = vlog2.pop %v529
        %v533 = vmul.f32 %v532, 0.6931472
        %v534 = vmul.f32 %v531, 0.4342945
        %v535 = vmul.f32 %v533, 0.4342945
        %v536 = vsel %vm227, %v534, -inf
        %v537 = vsel %vm227, %v535, -inf
        %v538 = vmax.f32 %v536, %v537
        %539 = vmax.xlane.f32.xlu0 %v538
        %v540 = vpop.xlane.xlu0 %539
        %v541 = vrot.slane %v540, 4
        %v542 = vmax.f32 %v540, %v541
        %v543 = vrot.slane %v542, 2
        %v544 = vmax.f32 %v542, %v543
        %v545 = vrot.slane %v544, 1
        %v546 = vmax.f32 %v544, %v545
        %s547 = vtos %v546
        %v548 = vstv %s547
        %v549 = vsub.f32 %v548, 8.0
        %v550 = vmax.f32 %v534, %v549
        %v551 = vmax.f32 %v535, %v549
        %v552 = vadd.f32 %v550, 4.0
        %v553 = vadd.f32 %v551, 4.0
        %v554 = vmul.f32 %v552, 0.25
        %v555 = vmul.f32 %v553, 0.25
        %556 = vst.msk [vmem:[%s217] sm:$0xff] %vm227, %v554
        %557 = vst.msk [vmem:[%s217 + $0x8] sm:$0xff] %vm227, %v555
        %s558 = sand.u32 %s97, 1
        %s559 = scalar_lea.sflag [#allocation5], %s558
        %s560 = sand.u32 %s97, 1
        %s561 = smul.addr %s560, 16
        %s562 = scalar_lea.vmem [#allocation9], %s561
        // Predicated region
        $region45: #{tpu_custom_call.1} parent=31 // pred_check
          %p563 = pneg %p107
        $region46: #{tpu_custom_call.1} parent=31 // pred_check_branch
          %565 = sbr.rel (%p563) target = $region48
        $region47: #{tpu_custom_call.1} parent=31 // pred_region
          %s567 = ssub.s32 256, 256
          %568 = vsyncadd %s559, %s567
          %s569 = smul.addr %s21, 2
          %s570 = smul.addr %s569, 128
          %s571 = scalar_lea.hbm %s3, %s570
          %s572 = sshll.u32 %s562, 4
          %s573 = int_to_ptr.vmem [resolvable:$true] %s572
          %578 = dma.vmem_to_hbm [thread:$0]  %s573, 256, %s571, %s559, 128, 128, 8
        $region48: #{tpu_custom_call.1} parent=31 // pred_fallthru
          _
      $region32: #{tpu_custom_call.1} parent=5 // pred_fallthru
        _
      %p579 = scmp.le.s32.totalorder 2, %s16
      // Predicated region
      $region49: #{tpu_custom_call.1} parent=5 // pred_check
        %p580 = pneg %p579
      $region50: #{tpu_custom_call.1} parent=5 // pred_check_branch
        %582 = sbr.rel (%p580) target = $region52
      $region51: #{tpu_custom_call.1} parent=5 // pred_region
        %s583 = ssub.s32 %s16, 2
        // Predicated region
        $region53: #{tpu_custom_call.1} parent=51 // pred_check
          %p584 = pneg %p113
        $region54: #{tpu_custom_call.1} parent=51 // pred_check_branch
          %586 = sbr.rel (%p584) target = $region56
        $region55: #{tpu_custom_call.1} parent=51 // pred_region
          %s587 = sand.u32 %s98, 1
          %s588 = scalar_lea.sflag [#allocation5], %s587
          %s589 = sand.u32 %s98, 1
          %s590 = smul.addr %s589, 16
          %s591 = scalar_lea.vmem [#allocation9], %s590
          %592 = dma.done %s588, 256
        $region56: #{tpu_custom_call.1} parent=51 // pred_fallthru
          _
      $region52: #{tpu_custom_call.1} parent=5 // pred_fallthru
        _
    $region6: #{tpu_custom_call.1} parent=1 // loop_footer
      %s20 = sadd.s32 1, %s16
    $region7: #{tpu_custom_call.1} parent=1 // loop_footer_branch
      %15 = sbr.rel target = $region3
    $region8: #{tpu_custom_call.1} parent=1 // loop_exit
      _
    %593 = vsyncpa [#allocation4], 1
    %s594 = scalar_lea.sflag [#allocation4], 1
    %595 = vsyncpa %s594, 1
    %596 = vsyncpa [#allocation7], 1
    %597 = vsyncpa [#allocation5], 1
    %s598 = scalar_lea.sflag [#allocation5], 1
    %599 = vsyncpa %s598, 1

</llo_original>
